<compile_context>
chip_gen: v6e
topology: v6e:2x2x1
jax: 0.10.0
libtpu: 0.0.40
codegen_flags: <defaults>
</compile_context>

<pallas_src>
import jax
import jax.numpy as jnp
from jax.experimental import pallas as pl
from jax.experimental.pallas import tpu as pltpu
import numpy as np


LANE = 128


def _round_up(x, m):
    return (x + m - 1) // m * m


def _act_dtype_for_device():
    """bf16 elementwise on chips with a bf16 VPU (v6e/v7x); f32 path on v5e."""
    try:
        kind = jax.devices()[0].device_kind.lower()
    except Exception:
        kind = ""
    if "v5" in kind and ("lite" in kind or "v5e" in kind):
        return jnp.float32
    return jnp.bfloat16


def _make_mlp_kernel(n_layers, act_dtype):
    def kernel(x_ref, *refs):
        """refs = (w0, b0, ..., wL, bL, out_ref); computes the whole MLP on one batch tile."""
        out_ref = refs[-1]
        p = refs[:-1]
        h = x_ref[...]                                     # bf16 (TM, in_pad)
        for i in range(n_layers):
            w = p[2 * i][...]                              # bf16 (in_pad, out_pad), VMEM-resident
            b = p[2 * i + 1][...]                          # f32  (1, out_pad)
            acc = jnp.dot(h.astype(w.dtype), w, preferred_element_type=jnp.float32)
            if i < n_layers - 1:
                # LeakyReLU(0.2): mul + max on the VPU, in the device-preferred dtype.
                h = acc.astype(act_dtype) + b.astype(act_dtype)
                h = jnp.maximum(h, 0.2 * h)
            else:
                # Only lane 0 of the padded last layer is real: slice it, sigmoid the
                # single column, then transpose to a lane-dense (1, TM) row and store.
                col = acc[:, :1] + b[:, :1]                # (TM, 1) f32
                col = jax.nn.sigmoid(col)
                out_ref[...] = jnp.transpose(col).astype(out_ref.dtype)
    return kernel


def prepare_params(params, *, param_dtype=jnp.bfloat16):
    """Pad every layer's output width to 128 lanes and the first layer's input width to a
    multiple of 32 (exact zero padding); cast weights to bf16.  (in, out) layout assumed."""
    prepped = []
    prev_out_orig = None
    prev_out_pad = None
    in_pad_first = None
    for li, (w, b) in enumerate(params):
        fan_in, fan_out = w.shape
        if prev_out_orig is not None:
            assert fan_in == prev_out_orig, "weights must be pre-transposed to (in, out)"
        assert b.shape == (1, fan_out), "bias must be shaped (1, out)"
        if li == 0:
            in_pad = _round_up(fan_in, 32)          # bf16 sublane-friendly K pad (exact)
            in_pad_first = in_pad
        else:
            in_pad = prev_out_pad
        out_pad = _round_up(fan_out, LANE)
        w_p = jnp.zeros((in_pad, out_pad), param_dtype).at[:fan_in, :fan_out].set(
            w.astype(param_dtype))
        b_p = jnp.zeros((1, out_pad), jnp.float32).at[:, :fan_out].set(b.astype(jnp.float32))
        prepped.append((w_p, b_p))
        prev_out_orig, prev_out_pad = fan_out, out_pad
    return prepped, in_pad_first


def patch_discriminator_forward(x, prepped_params, in_pad, *, tm=2048, act_dtype=None):
    """x: (B, C, H, W) (NCHW). prepped_params/in_pad from prepare_params(). Returns (B, 1)."""
    B = x.shape[0]
    if act_dtype is None:
        act_dtype = _act_dtype_for_device()

    # == input.view(B, -1); staged in bf16 (the MXU runs bf16 x bf16 anyway).
    x2d = x.reshape(B, -1).astype(jnp.bfloat16)
    in_dim = x2d.shape[1]
    if in_pad != in_dim:
        x2d = jnp.pad(x2d, ((0, 0), (0, in_pad - in_dim)))   # zero cols match zero w0 rows

    # Batch tile: one tile for small batches (block == full array); otherwise a
    # multiple of 256 chosen so the grid always has >= 2 steps (keeps both v7x TCs busy).
    B8 = _round_up(max(B, 1), 8)
    if B8 <= tm:
        TM = B8
    else:
        TM = min(tm, _round_up(pl.cdiv(B8, 2), 256))
    Bp = _round_up(B, TM)
    if Bp != B:
        x2d = jnp.pad(x2d, ((0, Bp - B), (0, 0)))

    flat = []
    flat_specs = []
    for w, b in prepped_params:
        flat += [w, b]
        # Full-array blocks, constant index_map -> weights/biases stay resident across steps.
        flat_specs += [
            pl.BlockSpec(w.shape, lambda i: (0, 0)),
            pl.BlockSpec(b.shape, lambda i: (0, 0)),
        ]

    # Explicit VMEM budget sized from the actual tiles (v7x has only 64 MiB physical).
    nbytes = lambda a: int(a.size) * a.dtype.itemsize
    tile_bytes = 2 * (TM * in_pad * x2d.dtype.itemsize)          # double-buffered x tile
    tile_bytes += 2 * (TM * 4)                                   # double-buffered (1, TM) out row
    tile_bytes += 2 * sum(nbytes(w) + nbytes(b) for w, b in prepped_params)
    vmem_limit = int(min(max(tile_bytes + (8 << 20), 16 << 20), 64 << 20))

    n_layers = len(prepped_params)
    out = pl.pallas_call(
        _make_mlp_kernel(n_layers, act_dtype),
        out_shape=jax.ShapeDtypeStruct((1, Bp), jnp.float32),
        grid=(Bp // TM,),
        in_specs=[pl.BlockSpec((TM, in_pad), lambda i: (i, 0))] + flat_specs,
        out_specs=pl.BlockSpec((1, TM), lambda i: (0, i)),
        compiler_params=pltpu.CompilerParams(
            dimension_semantics=("parallel",),   # shard batch tiles across TCs on v7x
            vmem_limit_bytes=vmem_limit,
        ),
    )(x2d, *flat)

    # Row 0 holds the lane-dense scores; padded batch rows are dropped here.
    return out[0, :B, None]


def init_params(key, in_dim, hidden_layers):
    """Deterministic init matching nn.Linear default (uniform +/- 1/sqrt(fan_in)); (in, out) layout."""
    dims = [in_dim] + list(hidden_layers) + [1]
    params = []
    for i in range(len(dims) - 1):
        key, kw, kb = jax.random.split(key, 3)
        bound = 1.0 / float(np.sqrt(dims[i]))
        w = jax.random.uniform(kw, (dims[i], dims[i + 1]), jnp.float32, -bound, bound)
        b = jax.random.uniform(kb, (1, dims[i + 1]), jnp.float32, -bound, bound)
        params.append((w, b))
    return params


def _reference_forward(x, params):
    """Pure-JAX f32 reference (mirrors the PyTorch module)."""
    h = x.reshape(x.shape[0], -1)
    for i, (w, b) in enumerate(params):
        h = h @ w + b
        if i < len(params) - 1:
            h = jnp.where(h > 0, h, 0.2 * h)
        else:
            h = jax.nn.sigmoid(h)
    return h


if __name__ == "__main__":
    # Module defaults: input_size=[3,3], channels=3, scales=1, informing_channels=0
    #  -> curr_width = 1 * 3 * 9 = 27
    input_size = [3, 3]
    channels = 3
    scales = 1
    informing_channels = 0
    hidden_layers = [256, 256, 128, 64, 32, 16]
    in_dim = int(scales * (channels + informing_channels) * int(np.prod(input_size)))

    key = jax.random.PRNGKey(0)
    kx, kp = jax.random.split(key)

    batch = 2
    # NCHW patch stack: (B, C, H, W) = (2, 3, 3, 3), flattens to (2, 27)
    x = jax.random.normal(kx, (batch, channels, input_size[0], input_size[1]), jnp.float32)
    params = init_params(kp, in_dim, hidden_layers)
    prepped, in_pad = prepare_params(params)

    score = patch_discriminator_forward(x, prepped, in_pad)
    score = jax.block_until_ready(score)

    assert score.shape == (batch, 1)
    assert bool(jnp.all((score >= 0.0) & (score <= 1.0)))  # sigmoid output range

    ref = _reference_forward(x, params)
    assert bool(jnp.max(jnp.abs(score - ref)) < 5e-2)  # bf16-weight/activation tolerance

    print("KERNEL_OK")
</pallas_src>

<mosaic_0001>
module attributes {stable_mosaic.version = 11 : i64} {
  func.func @kernel(%arg0: i32, %arg1: memref<8x32xbf16, #tpu.memory_space<vmem>>, %arg2: memref<32x256xbf16, #tpu.memory_space<vmem>>, %arg3: memref<1x256xf32, #tpu.memory_space<vmem>>, %arg4: memref<256x256xbf16, #tpu.memory_space<vmem>>, %arg5: memref<1x256xf32, #tpu.memory_space<vmem>>, %arg6: memref<256x128xbf16, #tpu.memory_space<vmem>>, %arg7: memref<1x128xf32, #tpu.memory_space<vmem>>, %arg8: memref<128x128xbf16, #tpu.memory_space<vmem>>, %arg9: memref<1x128xf32, #tpu.memory_space<vmem>>, %arg10: memref<128x128xbf16, #tpu.memory_space<vmem>>, %arg11: memref<1x128xf32, #tpu.memory_space<vmem>>, %arg12: memref<128x128xbf16, #tpu.memory_space<vmem>>, %arg13: memref<1x128xf32, #tpu.memory_space<vmem>>, %arg14: memref<128x128xbf16, #tpu.memory_space<vmem>>, %arg15: memref<1x128xf32, #tpu.memory_space<vmem>>, %arg16: memref<1x8xf32, #tpu.memory_space<vmem>>) attributes {dimension_semantics = [#tpu.dimension_semantics<parallel>], iteration_bounds = array<i64: 1>, scalar_prefetch = 0 : i64, scratch_operands = 0 : i64, tpu.core_type = #tpu.core_type<tc>, window_params = [{transform_indices = @transform_0, window_bounds = array<i64: 8, 32>}, {pipeline_mode = #tpu.pipeline_mode<synchronous>, transform_indices = @transform_1, window_bounds = array<i64: 32, 256>}, {pipeline_mode = #tpu.pipeline_mode<synchronous>, transform_indices = @transform_2, window_bounds = array<i64: 1, 256>}, {pipeline_mode = #tpu.pipeline_mode<synchronous>, transform_indices = @transform_3, window_bounds = array<i64: 256, 256>}, {pipeline_mode = #tpu.pipeline_mode<synchronous>, transform_indices = @transform_4, window_bounds = array<i64: 1, 256>}, {pipeline_mode = #tpu.pipeline_mode<synchronous>, transform_indices = @transform_5, window_bounds = array<i64: 256, 128>}, {pipeline_mode = #tpu.pipeline_mode<synchronous>, transform_indices = @transform_6, window_bounds = array<i64: 1, 128>}, {pipeline_mode = #tpu.pipeline_mode<synchronous>, transform_indices = @transform_7, window_bounds = array<i64: 128, 128>}, {pipeline_mode = #tpu.pipeline_mode<synchronous>, transform_indices = @transform_8, window_bounds = array<i64: 1, 128>}, {pipeline_mode = #tpu.pipeline_mode<synchronous>, transform_indices = @transform_9, window_bounds = array<i64: 128, 128>}, {pipeline_mode = #tpu.pipeline_mode<synchronous>, transform_indices = @transform_10, window_bounds = array<i64: 1, 128>}, {pipeline_mode = #tpu.pipeline_mode<synchronous>, transform_indices = @transform_11, window_bounds = array<i64: 128, 128>}, {pipeline_mode = #tpu.pipeline_mode<synchronous>, transform_indices = @transform_12, window_bounds = array<i64: 1, 128>}, {pipeline_mode = #tpu.pipeline_mode<synchronous>, transform_indices = @transform_13, window_bounds = array<i64: 128, 128>}, {pipeline_mode = #tpu.pipeline_mode<synchronous>, transform_indices = @transform_14, window_bounds = array<i64: 1, 128>}, {transform_indices = @transform_15, window_bounds = array<i64: 1, 8>}]} {
    %c0 = arith.constant 0 : index
    %c0_0 = arith.constant 0 : index
    %0 = vector.load %arg1[%c0, %c0_0] : memref<8x32xbf16, #tpu.memory_space<vmem>>, vector<8x32xbf16>
    %c0_1 = arith.constant 0 : index
    %c0_2 = arith.constant 0 : index
    %1 = vector.load %arg2[%c0_1, %c0_2] : memref<32x256xbf16, #tpu.memory_space<vmem>>, vector<32x256xbf16>
    %c0_3 = arith.constant 0 : index
    %c0_4 = arith.constant 0 : index
    %2 = vector.load %arg3[%c0_3, %c0_4] : memref<1x256xf32, #tpu.memory_space<vmem>>, vector<1x256xf32>
    %cst = arith.constant dense<0.000000e+00> : vector<8x256xf32>
    %3 = tpu.matmul %0, %1, %cst {dimension_numbers = #tpu.dot_dimension_numbers<[1], [0], [0], [1], [0, 0, 1, 1], [], []>} : vector<8x32xbf16>, vector<32x256xbf16>, vector<8x256xf32> -> vector<8x256xf32>
    %4 = arith.truncf %3 : vector<8x256xf32> to vector<8x256xbf16>
    %5 = arith.truncf %2 : vector<1x256xf32> to vector<1x256xbf16>
    %6 = vector.broadcast %5 : vector<1x256xbf16> to vector<8x256xbf16>
    %7 = arith.addf %4, %6 : vector<8x256xbf16>
    %cst_5 = arith.constant 2.001950e-01 : bf16
    %8 = vector.broadcast %cst_5 : bf16 to vector<8x256xbf16>
    %9 = arith.mulf %8, %7 : vector<8x256xbf16>
    %10 = arith.maximumf %7, %9 : vector<8x256xbf16>
    %c0_6 = arith.constant 0 : index
    %c0_7 = arith.constant 0 : index
    %11 = vector.load %arg4[%c0_6, %c0_7] : memref<256x256xbf16, #tpu.memory_space<vmem>>, vector<256x256xbf16>
    %c0_8 = arith.constant 0 : index
    %c0_9 = arith.constant 0 : index
    %12 = vector.load %arg5[%c0_8, %c0_9] : memref<1x256xf32, #tpu.memory_space<vmem>>, vector<1x256xf32>
    %cst_10 = arith.constant dense<0.000000e+00> : vector<8x256xf32>
    %13 = tpu.matmul %10, %11, %cst_10 {dimension_numbers = #tpu.dot_dimension_numbers<[1], [0], [0], [1], [0, 0, 1, 1], [], []>} : vector<8x256xbf16>, vector<256x256xbf16>, vector<8x256xf32> -> vector<8x256xf32>
    %14 = arith.truncf %13 : vector<8x256xf32> to vector<8x256xbf16>
    %15 = arith.truncf %12 : vector<1x256xf32> to vector<1x256xbf16>
    %16 = vector.broadcast %15 : vector<1x256xbf16> to vector<8x256xbf16>
    %17 = arith.addf %14, %16 : vector<8x256xbf16>
    %cst_11 = arith.constant 2.001950e-01 : bf16
    %18 = vector.broadcast %cst_11 : bf16 to vector<8x256xbf16>
    %19 = arith.mulf %18, %17 : vector<8x256xbf16>
    %20 = arith.maximumf %17, %19 : vector<8x256xbf16>
    %c0_12 = arith.constant 0 : index
    %c0_13 = arith.constant 0 : index
    %21 = vector.load %arg6[%c0_12, %c0_13] : memref<256x128xbf16, #tpu.memory_space<vmem>>, vector<256x128xbf16>
    %c0_14 = arith.constant 0 : index
    %c0_15 = arith.constant 0 : index
    %22 = vector.load %arg7[%c0_14, %c0_15] : memref<1x128xf32, #tpu.memory_space<vmem>>, vector<1x128xf32>
    %cst_16 = arith.constant dense<0.000000e+00> : vector<8x128xf32>
    %23 = tpu.matmul %20, %21, %cst_16 {dimension_numbers = #tpu.dot_dimension_numbers<[1], [0], [0], [1], [0, 0, 1, 1], [], []>} : vector<8x256xbf16>, vector<256x128xbf16>, vector<8x128xf32> -> vector<8x128xf32>
    %24 = arith.truncf %23 : vector<8x128xf32> to vector<8x128xbf16>
    %25 = arith.truncf %22 : vector<1x128xf32> to vector<1x128xbf16>
    %26 = vector.broadcast %25 : vector<1x128xbf16> to vector<8x128xbf16>
    %27 = arith.addf %24, %26 : vector<8x128xbf16>
    %cst_17 = arith.constant 2.001950e-01 : bf16
    %28 = vector.broadcast %cst_17 : bf16 to vector<8x128xbf16>
    %29 = arith.mulf %28, %27 : vector<8x128xbf16>
    %30 = arith.maximumf %27, %29 : vector<8x128xbf16>
    %c0_18 = arith.constant 0 : index
    %c0_19 = arith.constant 0 : index
    %31 = vector.load %arg8[%c0_18, %c0_19] : memref<128x128xbf16, #tpu.memory_space<vmem>>, vector<128x128xbf16>
    %c0_20 = arith.constant 0 : index
    %c0_21 = arith.constant 0 : index
    %32 = vector.load %arg9[%c0_20, %c0_21] : memref<1x128xf32, #tpu.memory_space<vmem>>, vector<1x128xf32>
    %cst_22 = arith.constant dense<0.000000e+00> : vector<8x128xf32>
    %33 = tpu.matmul %30, %31, %cst_22 {dimension_numbers = #tpu.dot_dimension_numbers<[1], [0], [0], [1], [0, 0, 1, 1], [], []>} : vector<8x128xbf16>, vector<128x128xbf16>, vector<8x128xf32> -> vector<8x128xf32>
    %34 = arith.truncf %33 : vector<8x128xf32> to vector<8x128xbf16>
    %35 = arith.truncf %32 : vector<1x128xf32> to vector<1x128xbf16>
    %36 = vector.broadcast %35 : vector<1x128xbf16> to vector<8x128xbf16>
    %37 = arith.addf %34, %36 : vector<8x128xbf16>
    %cst_23 = arith.constant 2.001950e-01 : bf16
    %38 = vector.broadcast %cst_23 : bf16 to vector<8x128xbf16>
    %39 = arith.mulf %38, %37 : vector<8x128xbf16>
    %40 = arith.maximumf %37, %39 : vector<8x128xbf16>
    %c0_24 = arith.constant 0 : index
    %c0_25 = arith.constant 0 : index
    %41 = vector.load %arg10[%c0_24, %c0_25] : memref<128x128xbf16, #tpu.memory_space<vmem>>, vector<128x128xbf16>
    %c0_26 = arith.constant 0 : index
    %c0_27 = arith.constant 0 : index
    %42 = vector.load %arg11[%c0_26, %c0_27] : memref<1x128xf32, #tpu.memory_space<vmem>>, vector<1x128xf32>
    %cst_28 = arith.constant dense<0.000000e+00> : vector<8x128xf32>
    %43 = tpu.matmul %40, %41, %cst_28 {dimension_numbers = #tpu.dot_dimension_numbers<[1], [0], [0], [1], [0, 0, 1, 1], [], []>} : vector<8x128xbf16>, vector<128x128xbf16>, vector<8x128xf32> -> vector<8x128xf32>
    %44 = arith.truncf %43 : vector<8x128xf32> to vector<8x128xbf16>
    %45 = arith.truncf %42 : vector<1x128xf32> to vector<1x128xbf16>
    %46 = vector.broadcast %45 : vector<1x128xbf16> to vector<8x128xbf16>
    %47 = arith.addf %44, %46 : vector<8x128xbf16>
    %cst_29 = arith.constant 2.001950e-01 : bf16
    %48 = vector.broadcast %cst_29 : bf16 to vector<8x128xbf16>
    %49 = arith.mulf %48, %47 : vector<8x128xbf16>
    %50 = arith.maximumf %47, %49 : vector<8x128xbf16>
    %c0_30 = arith.constant 0 : index
    %c0_31 = arith.constant 0 : index
    %51 = vector.load %arg12[%c0_30, %c0_31] : memref<128x128xbf16, #tpu.memory_space<vmem>>, vector<128x128xbf16>
    %c0_32 = arith.constant 0 : index
    %c0_33 = arith.constant 0 : index
    %52 = vector.load %arg13[%c0_32, %c0_33] : memref<1x128xf32, #tpu.memory_space<vmem>>, vector<1x128xf32>
    %cst_34 = arith.constant dense<0.000000e+00> : vector<8x128xf32>
    %53 = tpu.matmul %50, %51, %cst_34 {dimension_numbers = #tpu.dot_dimension_numbers<[1], [0], [0], [1], [0, 0, 1, 1], [], []>} : vector<8x128xbf16>, vector<128x128xbf16>, vector<8x128xf32> -> vector<8x128xf32>
    %54 = arith.truncf %53 : vector<8x128xf32> to vector<8x128xbf16>
    %55 = arith.truncf %52 : vector<1x128xf32> to vector<1x128xbf16>
    %56 = vector.broadcast %55 : vector<1x128xbf16> to vector<8x128xbf16>
    %57 = arith.addf %54, %56 : vector<8x128xbf16>
    %cst_35 = arith.constant 2.001950e-01 : bf16
    %58 = vector.broadcast %cst_35 : bf16 to vector<8x128xbf16>
    %59 = arith.mulf %58, %57 : vector<8x128xbf16>
    %60 = arith.maximumf %57, %59 : vector<8x128xbf16>
    %c0_36 = arith.constant 0 : index
    %c0_37 = arith.constant 0 : index
    %61 = vector.load %arg14[%c0_36, %c0_37] : memref<128x128xbf16, #tpu.memory_space<vmem>>, vector<128x128xbf16>
    %c0_38 = arith.constant 0 : index
    %c0_39 = arith.constant 0 : index
    %62 = vector.load %arg15[%c0_38, %c0_39] : memref<1x128xf32, #tpu.memory_space<vmem>>, vector<1x128xf32>
    %cst_40 = arith.constant dense<0.000000e+00> : vector<8x128xf32>
    %63 = tpu.matmul %60, %61, %cst_40 {dimension_numbers = #tpu.dot_dimension_numbers<[1], [0], [0], [1], [0, 0, 1, 1], [], []>} : vector<8x128xbf16>, vector<128x128xbf16>, vector<8x128xf32> -> vector<8x128xf32>
    %64 = vector.extract_strided_slice %63 {offsets = [0, 0], sizes = [8, 1], strides = [1, 1]} : vector<8x128xf32> to vector<8x1xf32>
    %65 = vector.extract_strided_slice %62 {offsets = [0, 0], sizes = [1, 1], strides = [1, 1]} : vector<1x128xf32> to vector<1x1xf32>
    %66 = vector.broadcast %65 : vector<1x1xf32> to vector<8x1xf32>
    %67 = arith.addf %64, %66 : vector<8x1xf32>
    %68 = arith.negf %67 : vector<8x1xf32>
    %69 = math.exp %68 : vector<8x1xf32>
    %cst_41 = arith.constant 1.000000e+00 : f32
    %70 = vector.broadcast %cst_41 : f32 to vector<8x1xf32>
    %71 = arith.addf %70, %69 : vector<8x1xf32>
    %72 = arith.divf %70, %71 : vector<8x1xf32>
    %73 = tpu.transpose %72, [1, 0] : vector<8x1xf32> -> vector<1x8xf32>
    %c0_42 = arith.constant 0 : index
    %c0_43 = arith.constant 0 : index
    %74 = vector.load %arg16[%c0_42, %c0_43] : memref<1x8xf32, #tpu.memory_space<vmem>>, vector<1x8xf32>
    tpu.vector_store %arg16[%c0_42, %c0_43], %73 {strides = array<i32>} : memref<1x8xf32, #tpu.memory_space<vmem>>, vector<1x8xf32>,
    return
  }
  func.func @transform_0(%arg0: i32) -> (i32, i32) {
    %c0_i32 = arith.constant 0 : i32
    %c0_i32_0 = arith.constant 0 : i32
    return %arg0, %c0_i32 : i32, i32
  }
  func.func @transform_1(%arg0: i32) -> (i32, i32) {
    %c0_i32 = arith.constant 0 : i32
    %c0_i32_0 = arith.constant 0 : i32
    %c0_i32_1 = arith.constant 0 : i32
    return %c0_i32, %c0_i32_0 : i32, i32
  }
  func.func @transform_2(%arg0: i32) -> (i32, i32) {
    %c0_i32 = arith.constant 0 : i32
    %c0_i32_0 = arith.constant 0 : i32
    %c0_i32_1 = arith.constant 0 : i32
    return %c0_i32, %c0_i32_0 : i32, i32
  }
  func.func @transform_3(%arg0: i32) -> (i32, i32) {
    %c0_i32 = arith.constant 0 : i32
    %c0_i32_0 = arith.constant 0 : i32
    %c0_i32_1 = arith.constant 0 : i32
    return %c0_i32, %c0_i32_0 : i32, i32
  }
  func.func @transform_4(%arg0: i32) -> (i32, i32) {
    %c0_i32 = arith.constant 0 : i32
    %c0_i32_0 = arith.constant 0 : i32
    %c0_i32_1 = arith.constant 0 : i32
    return %c0_i32, %c0_i32_0 : i32, i32
  }
  func.func @transform_5(%arg0: i32) -> (i32, i32) {
    %c0_i32 = arith.constant 0 : i32
    %c0_i32_0 = arith.constant 0 : i32
    %c0_i32_1 = arith.constant 0 : i32
    return %c0_i32, %c0_i32_0 : i32, i32
  }
  func.func @transform_6(%arg0: i32) -> (i32, i32) {
    %c0_i32 = arith.constant 0 : i32
    %c0_i32_0 = arith.constant 0 : i32
    %c0_i32_1 = arith.constant 0 : i32
    return %c0_i32, %c0_i32_0 : i32, i32
  }
  func.func @transform_7(%arg0: i32) -> (i32, i32) {
    %c0_i32 = arith.constant 0 : i32
    %c0_i32_0 = arith.constant 0 : i32
    %c0_i32_1 = arith.constant 0 : i32
    return %c0_i32, %c0_i32_0 : i32, i32
  }
  func.func @transform_8(%arg0: i32) -> (i32, i32) {
    %c0_i32 = arith.constant 0 : i32
    %c0_i32_0 = arith.constant 0 : i32
    %c0_i32_1 = arith.constant 0 : i32
    return %c0_i32, %c0_i32_0 : i32, i32
  }
  func.func @transform_9(%arg0: i32) -> (i32, i32) {
    %c0_i32 = arith.constant 0 : i32
    %c0_i32_0 = arith.constant 0 : i32
    %c0_i32_1 = arith.constant 0 : i32
    return %c0_i32, %c0_i32_0 : i32, i32
  }
  func.func @transform_10(%arg0: i32) -> (i32, i32) {
    %c0_i32 = arith.constant 0 : i32
    %c0_i32_0 = arith.constant 0 : i32
    %c0_i32_1 = arith.constant 0 : i32
    return %c0_i32, %c0_i32_0 : i32, i32
  }
  func.func @transform_11(%arg0: i32) -> (i32, i32) {
    %c0_i32 = arith.constant 0 : i32
    %c0_i32_0 = arith.constant 0 : i32
    %c0_i32_1 = arith.constant 0 : i32
    return %c0_i32, %c0_i32_0 : i32, i32
  }
  func.func @transform_12(%arg0: i32) -> (i32, i32) {
    %c0_i32 = arith.constant 0 : i32
    %c0_i32_0 = arith.constant 0 : i32
    %c0_i32_1 = arith.constant 0 : i32
    return %c0_i32, %c0_i32_0 : i32, i32
  }
  func.func @transform_13(%arg0: i32) -> (i32, i32) {
    %c0_i32 = arith.constant 0 : i32
    %c0_i32_0 = arith.constant 0 : i32
    %c0_i32_1 = arith.constant 0 : i32
    return %c0_i32, %c0_i32_0 : i32, i32
  }
  func.func @transform_14(%arg0: i32) -> (i32, i32) {
    %c0_i32 = arith.constant 0 : i32
    %c0_i32_0 = arith.constant 0 : i32
    %c0_i32_1 = arith.constant 0 : i32
    return %c0_i32, %c0_i32_0 : i32, i32
  }
  func.func @transform_15(%arg0: i32) -> (i32, i32) {
    %c0_i32 = arith.constant 0 : i32
    %c0_i32_0 = arith.constant 0 : i32
    return %c0_i32, %arg0 : i32, i32
  }
}

</mosaic_0001>

<llo_original>
// kernel: tpu_custom_call.1
$region0: #{tpu_custom_call.1}
  #allocation0 [shape = 'u32[]', space=smem, size = 0x4, offset = 0x4, fixed_abs, tag = 'smem constant byte address 0x4 - core index']
  #allocation1 [shape = 'u32[144,128]{1,0:T(1,128)}', space=vmem, size = 0x12000, scoped, tag = 'internal scratch']
  %s0 = inlined_call_operand.hbm [shape: bf16[8,32], index: 0, kind: input, shape index: {}]
  %s1 = inlined_call_operand.hbm [shape: bf16[32,256], index: 1, kind: input, shape index: {}]
  %s2 = inlined_call_operand.vmem [shape: f32[1,256], index: 2, kind: input, shape index: {}]
  %s3 = inlined_call_operand.hbm [shape: bf16[256,256], index: 3, kind: input, shape index: {}]
  %s4 = inlined_call_operand.vmem [shape: f32[1,256], index: 4, kind: input, shape index: {}]
  %s5 = inlined_call_operand.hbm [shape: bf16[256,128], index: 5, kind: input, shape index: {}]
  %s6 = inlined_call_operand.vmem [shape: f32[1,128], index: 6, kind: input, shape index: {}]
  %s7 = inlined_call_operand.hbm [shape: bf16[128,128], index: 7, kind: input, shape index: {}]
  %s8 = inlined_call_operand.vmem [shape: f32[1,128], index: 8, kind: input, shape index: {}]
  %s9 = inlined_call_operand.hbm [shape: bf16[128,128], index: 9, kind: input, shape index: {}]
  %s10 = inlined_call_operand.vmem [shape: f32[1,128], index: 10, kind: input, shape index: {}]
  %s11 = inlined_call_operand.hbm [shape: bf16[128,128], index: 11, kind: input, shape index: {}]
  %s12 = inlined_call_operand.vmem [shape: f32[1,128], index: 12, kind: input, shape index: {}]
  %s13 = inlined_call_operand.hbm [shape: bf16[128,128], index: 13, kind: input, shape index: {}]
  %s14 = inlined_call_operand.vmem [shape: f32[1,128], index: 14, kind: input, shape index: {}]
  %s15 = inlined_call_operand.hbm [shape: f32[1,8], index: 15, kind: output, shape index: {}]
  %s16 = sld [smem:[#allocation0]]
  $region102: #{tpu_custom_call.1} parent=0
    _
  %s18 = ssub.s32 1, %s16
  %s19 = scalar_select 0, %s18, %s16
  $region1: #{tpu_custom_call.1} parent=0
    #allocation2 [shape = 'u8[2048]{0}', space=vmem, size = 0x800, scoped, tag = 'input window, operand 0, single buffered']
    #allocation3 [shape = 's32[1]{0}', space=sflag, size = 0x4, scoped, tag = 'scoped memory for tpu_custom_call.1']
    #allocation4 [shape = 's32[1]{0}', space=sflag, size = 0x4, scoped, tag = 'scoped memory for tpu_custom_call.1']
    #allocation5 [shape = 'u8[16384]{0}', space=vmem, size = 0x4000, scoped, tag = 'input window, operand 1, single buffered']
    #allocation6 [shape = 's32[1]{0}', space=sflag, size = 0x4, scoped, tag = 'scoped memory for tpu_custom_call.1']
    #allocation7 [shape = 'u8[131072]{0}', space=vmem, size = 0x20000, scoped, tag = 'input window, operand 3, single buffered']
    #allocation8 [shape = 'u8[65536]{0}', space=vmem, size = 0x10000, scoped, tag = 'input window, operand 5, single buffered']
    #allocation9 [shape = 's32[1]{0}', space=sflag, size = 0x4, scoped, tag = 'scoped memory for tpu_custom_call.1']
    #allocation10 [shape = 'u8[32768]{0}', space=vmem, size = 0x8000, scoped, tag = 'input window, operand 7, single buffered']
    #allocation11 [shape = 'u8[32768]{0}', space=vmem, size = 0x8000, scoped, tag = 'input window, operand 9, single buffered']
    #allocation12 [shape = 's32[1]{0}', space=sflag, size = 0x4, scoped, tag = 'scoped memory for tpu_custom_call.1']
    #allocation13 [shape = 'u8[32768]{0}', space=vmem, size = 0x8000, scoped, tag = 'input window, operand 11, single buffered']
    #allocation14 [shape = 'u8[32768]{0}', space=vmem, size = 0x8000, scoped, tag = 'input window, operand 13, single buffered']
    #allocation15 [shape = 's32[1]{0}', space=sflag, size = 0x4, scoped, tag = 'scoped memory for tpu_custom_call.1']
    #allocation16 [shape = 'u8[512]{0}', space=vmem, size = 0x400, scoped, tag = 'output window, operand 0, single buffered']
    %20 = vsyncpa [#allocation3], 0
    %21 = vsyncpa [#allocation6], 0
    %22 = vsyncpa [#allocation9], 0
    %23 = vsyncpa [#allocation12], 0
    %24 = vsyncpa [#allocation15], 0
    %25 = vsyncpa [#allocation4], 0
    // Predicated region
    $region2: #{tpu_custom_call.1} parent=1 // pred_check
      _
    $region3: #{tpu_custom_call.1} parent=1 // pred_check_branch
      %27 = sbr.rel (0) target = $region5
    $region4: #{tpu_custom_call.1} parent=1 // pred_region
      %s29 = ssub.s32 64, 64
      %30 = vsyncadd [#allocation3], %s29
      %s32 = sshll.u32 [#allocation2], 4
      %s33 = int_to_ptr.vmem [resolvable:$true] %s32
      %35 = dma.hbm_to_vmem [thread:$0]  %s0, 64, %s33, [#allocation3]
    $region5: #{tpu_custom_call.1} parent=1 // pred_fallthru
      _
    // Predicated region
    $region6: #{tpu_custom_call.1} parent=1 // pred_check
      _
    $region7: #{tpu_custom_call.1} parent=1 // pred_check_branch
      %37 = sbr.rel (0) target = $region9
    $region8: #{tpu_custom_call.1} parent=1 // pred_region
      %s39 = ssub.s32 512, 512
      %40 = vsyncadd [#allocation6], %s39
      %s41 = sshll.u32 [#allocation5], 4
      %s42 = int_to_ptr.vmem [resolvable:$true] %s41
      %47 = dma.hbm_to_vmem [thread:$0]  %s1, 512, %s42, [#allocation6], 128, 128, 8
    $region9: #{tpu_custom_call.1} parent=1 // pred_fallthru
      _
    // Predicated region
    $region10: #{tpu_custom_call.1} parent=1 // pred_check
      _
    $region11: #{tpu_custom_call.1} parent=1 // pred_check_branch
      %49 = sbr.rel (0) target = $region13
    $region12: #{tpu_custom_call.1} parent=1 // pred_region
      _
    $region13: #{tpu_custom_call.1} parent=1 // pred_fallthru
      _
    // Predicated region
    $region14: #{tpu_custom_call.1} parent=1 // pred_check
      _
    $region15: #{tpu_custom_call.1} parent=1 // pred_check_branch
      %51 = sbr.rel (0) target = $region17
    $region16: #{tpu_custom_call.1} parent=1 // pred_region
      %s53 = ssub.s32 4096, 4096
      %54 = vsyncadd [#allocation6], %s53
      %s55 = sshll.u32 [#allocation7], 4
      %s56 = int_to_ptr.vmem [resolvable:$true] %s55
      %61 = dma.hbm_to_vmem [thread:$0]  %s3, 4096, %s56, [#allocation6], 128, 128, 8
    $region17: #{tpu_custom_call.1} parent=1 // pred_fallthru
      _
    // Predicated region
    $region18: #{tpu_custom_call.1} parent=1 // pred_check
      _
    $region19: #{tpu_custom_call.1} parent=1 // pred_check_branch
      %63 = sbr.rel (0) target = $region21
    $region20: #{tpu_custom_call.1} parent=1 // pred_region
      _
    $region21: #{tpu_custom_call.1} parent=1 // pred_fallthru
      _
    // Predicated region
    $region22: #{tpu_custom_call.1} parent=1 // pred_check
      _
    $region23: #{tpu_custom_call.1} parent=1 // pred_check_branch
      %65 = sbr.rel (0) target = $region25
    $region24: #{tpu_custom_call.1} parent=1 // pred_region
      %s67 = ssub.s32 2048, 2048
      %68 = vsyncadd [#allocation9], %s67
      %s69 = sshll.u32 [#allocation8], 4
      %s70 = int_to_ptr.vmem [resolvable:$true] %s69
      %75 = dma.hbm_to_vmem [thread:$0]  %s5, 2048, %s70, [#allocation9], 64, 64, 4
    $region25: #{tpu_custom_call.1} parent=1 // pred_fallthru
      _
    // Predicated region
    $region26: #{tpu_custom_call.1} parent=1 // pred_check
      _
    $region27: #{tpu_custom_call.1} parent=1 // pred_check_branch
      %77 = sbr.rel (0) target = $region29
    $region28: #{tpu_custom_call.1} parent=1 // pred_region
      _
    $region29: #{tpu_custom_call.1} parent=1 // pred_fallthru
      _
    // Predicated region
    $region30: #{tpu_custom_call.1} parent=1 // pred_check
      _
    $region31: #{tpu_custom_call.1} parent=1 // pred_check_branch
      %79 = sbr.rel (0) target = $region33
    $region32: #{tpu_custom_call.1} parent=1 // pred_region
      %s81 = ssub.s32 1024, 1024
      %82 = vsyncadd [#allocation9], %s81
      %s83 = sshll.u32 [#allocation10], 4
      %s84 = int_to_ptr.vmem [resolvable:$true] %s83
      %89 = dma.hbm_to_vmem [thread:$0]  %s7, 1024, %s84, [#allocation9], 64, 64, 4
    $region33: #{tpu_custom_call.1} parent=1 // pred_fallthru
      _
    // Predicated region
    $region34: #{tpu_custom_call.1} parent=1 // pred_check
      _
    $region35: #{tpu_custom_call.1} parent=1 // pred_check_branch
      %91 = sbr.rel (0) target = $region37
    $region36: #{tpu_custom_call.1} parent=1 // pred_region
      _
    $region37: #{tpu_custom_call.1} parent=1 // pred_fallthru
      _
    // Predicated region
    $region38: #{tpu_custom_call.1} parent=1 // pred_check
      _
    $region39: #{tpu_custom_call.1} parent=1 // pred_check_branch
      %93 = sbr.rel (0) target = $region41
    $region40: #{tpu_custom_call.1} parent=1 // pred_region
      %s95 = ssub.s32 1024, 1024
      %96 = vsyncadd [#allocation12], %s95
      %s97 = sshll.u32 [#allocation11], 4
      %s98 = int_to_ptr.vmem [resolvable:$true] %s97
      %103 = dma.hbm_to_vmem [thread:$0]  %s9, 1024, %s98, [#allocation12], 64, 64, 4
    $region41: #{tpu_custom_call.1} parent=1 // pred_fallthru
      _
    // Predicated region
    $region42: #{tpu_custom_call.1} parent=1 // pred_check
      _
    $region43: #{tpu_custom_call.1} parent=1 // pred_check_branch
      %105 = sbr.rel (0) target = $region45
    $region44: #{tpu_custom_call.1} parent=1 // pred_region
      _
    $region45: #{tpu_custom_call.1} parent=1 // pred_fallthru
      _
    // Predicated region
    $region46: #{tpu_custom_call.1} parent=1 // pred_check
      _
    $region47: #{tpu_custom_call.1} parent=1 // pred_check_branch
      %107 = sbr.rel (0) target = $region49
    $region48: #{tpu_custom_call.1} parent=1 // pred_region
      %s109 = ssub.s32 1024, 1024
      %110 = vsyncadd [#allocation12], %s109
      %s111 = sshll.u32 [#allocation13], 4
      %s112 = int_to_ptr.vmem [resolvable:$true] %s111
      %117 = dma.hbm_to_vmem [thread:$0]  %s11, 1024, %s112, [#allocation12], 64, 64, 4
    $region49: #{tpu_custom_call.1} parent=1 // pred_fallthru
      _
    // Predicated region
    $region50: #{tpu_custom_call.1} parent=1 // pred_check
      _
    $region51: #{tpu_custom_call.1} parent=1 // pred_check_branch
      %119 = sbr.rel (0) target = $region53
    $region52: #{tpu_custom_call.1} parent=1 // pred_region
      _
    $region53: #{tpu_custom_call.1} parent=1 // pred_fallthru
      _
    // Predicated region
    $region54: #{tpu_custom_call.1} parent=1 // pred_check
      _
    $region55: #{tpu_custom_call.1} parent=1 // pred_check_branch
      %121 = sbr.rel (0) target = $region57
    $region56: #{tpu_custom_call.1} parent=1 // pred_region
      %s123 = ssub.s32 1024, 1024
      %124 = vsyncadd [#allocation15], %s123
      %s125 = sshll.u32 [#allocation14], 4
      %s126 = int_to_ptr.vmem [resolvable:$true] %s125
      %131 = dma.hbm_to_vmem [thread:$0]  %s13, 1024, %s126, [#allocation15], 64, 64, 4
    $region57: #{tpu_custom_call.1} parent=1 // pred_fallthru
      _
    // Predicated region
    $region58: #{tpu_custom_call.1} parent=1 // pred_check
      _
    $region59: #{tpu_custom_call.1} parent=1 // pred_check_branch
      %133 = sbr.rel (0) target = $region61
    $region60: #{tpu_custom_call.1} parent=1 // pred_region
      _
    $region61: #{tpu_custom_call.1} parent=1 // pred_fallthru
      _
    // Predicated region
    $region62: #{tpu_custom_call.1} parent=1 // pred_check
      _
    $region63: #{tpu_custom_call.1} parent=1 // pred_check_branch
      %135 = sbr.rel (0) target = $region65
    $region64: #{tpu_custom_call.1} parent=1 // pred_region
      %136 = dma.done [#allocation3], 64
    $region65: #{tpu_custom_call.1} parent=1 // pred_fallthru
      _
    // Predicated region
    $region66: #{tpu_custom_call.1} parent=1 // pred_check
      _
    $region67: #{tpu_custom_call.1} parent=1 // pred_check_branch
      %138 = sbr.rel (0) target = $region69
    $region68: #{tpu_custom_call.1} parent=1 // pred_region
      %139 = dma.done [#allocation6], 512
    $region69: #{tpu_custom_call.1} parent=1 // pred_fallthru
      _
    // Predicated region
    $region70: #{tpu_custom_call.1} parent=1 // pred_check
      _
    $region71: #{tpu_custom_call.1} parent=1 // pred_check_branch
      %141 = sbr.rel (0) target = $region73
    $region72: #{tpu_custom_call.1} parent=1 // pred_region
      %142 = dma.done [#allocation6], 4096
    $region73: #{tpu_custom_call.1} parent=1 // pred_fallthru
      _
    // Predicated region
    $region74: #{tpu_custom_call.1} parent=1 // pred_check
      _
    $region75: #{tpu_custom_call.1} parent=1 // pred_check_branch
      %144 = sbr.rel (0) target = $region77
    $region76: #{tpu_custom_call.1} parent=1 // pred_region
      %145 = dma.done [#allocation9], 2048
    $region77: #{tpu_custom_call.1} parent=1 // pred_fallthru
      _
    // Predicated region
    $region78: #{tpu_custom_call.1} parent=1 // pred_check
      _
    $region79: #{tpu_custom_call.1} parent=1 // pred_check_branch
      %147 = sbr.rel (0) target = $region81
    $region80: #{tpu_custom_call.1} parent=1 // pred_region
      %148 = dma.done [#allocation9], 1024
    $region81: #{tpu_custom_call.1} parent=1 // pred_fallthru
      _
    // Predicated region
    $region82: #{tpu_custom_call.1} parent=1 // pred_check
      _
    $region83: #{tpu_custom_call.1} parent=1 // pred_check_branch
      %150 = sbr.rel (0) target = $region85
    $region84: #{tpu_custom_call.1} parent=1 // pred_region
      %151 = dma.done [#allocation12], 1024
    $region85: #{tpu_custom_call.1} parent=1 // pred_fallthru
      _
    // Predicated region
    $region86: #{tpu_custom_call.1} parent=1 // pred_check
      _
    $region87: #{tpu_custom_call.1} parent=1 // pred_check_branch
      %153 = sbr.rel (0) target = $region89
    $region88: #{tpu_custom_call.1} parent=1 // pred_region
      %154 = dma.done [#allocation12], 1024
    $region89: #{tpu_custom_call.1} parent=1 // pred_fallthru
      _
    // Predicated region
    $region90: #{tpu_custom_call.1} parent=1 // pred_check
      _
    $region91: #{tpu_custom_call.1} parent=1 // pred_check_branch
      %156 = sbr.rel (0) target = $region93
    $region92: #{tpu_custom_call.1} parent=1 // pred_region
      %157 = dma.done [#allocation15], 1024
    $region93: #{tpu_custom_call.1} parent=1 // pred_fallthru
      _
    %v160 = vld [vmem:[#allocation2] sm:$0xf]
    %v161 = vld [vmem:[#allocation5] sm:$0xff]
    %v162 = vld [vmem:[#allocation5 + $0x8] sm:$0xff]
    %v163 = vld [vmem:[#allocation5 + $0x10] sm:$0xff]
    %v164 = vld [vmem:[#allocation5 + $0x18] sm:$0xff]
    %v165 = vld [vmem:[%s2] sm:$0x3]
    %v170 = vunpack.c.l.b16 %v161
    %v171 = vunpack.c.h.b16 %v161
    %v172 = vunpack.c.l.b16 %v162
    %v173 = vunpack.c.h.b16 %v162
    %v174 = vunpack.c.l.b16 %v163
    %v175 = vunpack.c.h.b16 %v163
    %v176 = vunpack.c.l.b16 %v164
    %v177 = vunpack.c.h.b16 %v164
    %v178 = vpack.c.b16 %v172, %v170
    %v179 = vpack.c.b16 %v173, %v171
    %v180 = vpack.c.b16 %v176, %v174
    %v181 = vpack.c.b16 %v177, %v175
    %vm186 = vcmask 261120
    %v188 = vsel %vm186, %v160, 0
    %190 = vmatprep.subr.bf16.mxu0 0
    %191 = vmatpush1.bf16.msra.mxu0 0
    %192 = vmatprep.subr.bf16.mxu0 0
    %193 = vmatpush1.bf16.msra.mxu0 0
    %194 = vmatprep.subr.bf16.mxu0 0
    %195 = vmatpush1.bf16.msra.mxu0 0
    %196 = vmatprep.subr.bf16.mxu0 0
    %197 = vmatpush1.bf16.msra.mxu0 0
    %198 = vmatprep.subr.bf16.mxu0 0
    %199 = vmatpush1.bf16.msra.mxu0 0
    %200 = vmatprep.subr.bf16.mxu0 0
    %201 = vmatpush1.bf16.msra.mxu0 0
    %202 = vmatprep.subr.bf16.mxu0 %v181
    %203 = vmatpush1.bf16.msra.mxu0 %v180
    %204 = vmatprep.subr.bf16.mxu0 %v179
    %205 = vmatpush1.bf16.msra.mxu0 %v178
    %206 = vmatprep.subr.bf16.mxu0 0
    %207 = vmatpush2.bf16.msra.mxu0 0
    %208 = vmatprep.subr.bf16.mxu0 0
    %209 = vmatpush2.bf16.msra.mxu0 0
    %210 = vmatprep.subr.bf16.mxu0 0
    %211 = vmatpush2.bf16.msra.mxu0 0
    %212 = vmatprep.subr.bf16.mxu0 0
    %213 = vmatpush2.bf16.msra.mxu0 0
    %214 = vmatprep.subr.bf16.mxu0 0
    %215 = vmatpush2.bf16.msra.mxu0 0
    %216 = vmatprep.subr.bf16.mxu0 0
    %217 = vmatpush2.bf16.msra.mxu0 0
    %218 = vmatprep.subr.bf16.mxu0 0
    %219 = vmatpush2.bf16.msra.mxu0 0
    %220 = vmatprep.subr.bf16.mxu0 0
    %221 = vmatpush2.bf16.msra.mxu0 0
    %222 = vmatprep.mubr.bf16.mxu0 0
    %223 = vmatmul.mubr.bf16.gmra.mxu0 %v188
    %v224 = vpop.f32.mrf.mxu0
    %v225 = vadd.f32 0.0, %v224
    %v226 = vpop.f32.mrf.mxu0
    %v227 = vadd.f32 0.0, %v226
    %v228 = vpop.f32.mrf.mxu0
    %v229 = vpop.f32.mrf.mxu0
    %230 = vdwg.mxu0
    %v231 = vpack.c.bf16 %v225, %v225
    %v232 = vpack.c.bf16 %v227, %v227
    %v234 = vlaneseq
    %v235 = vshrl.u32 %v234, 7
    %v236 = vsub.s32 0, %v235
    %v237 = vrot.slane %v165, %v236
    %v238 = vlaneseq
    %v239 = vshrl.u32 %v238, 7
    %v240 = vsub.s32 1, %v239
    %v241 = vrot.slane %v165, %v240
    %v244 = vpack.c.bf16 %v237, %v237
    %v245 = vpack.c.bf16 %v241, %v241
    %v247 = vpack.i.b16 %v244, %v244
    %v249 = vlaneseq
    %v250 = vshrl.u32 %v249, 7
    %v251 = vsub.s32 0, %v250
    %v252 = vrot.slane %v247, %v251
    %v254 = vpack.i.b16 %v245, %v245
    %v256 = vlaneseq
    %v257 = vshrl.u32 %v256, 7
    %v258 = vsub.s32 0, %v257
    %v259 = vrot.slane %v254, %v258
    %v260 = vadd.bf16 %v231, %v252
    %v261 = vadd.bf16 %v232, %v259
    %v262 = vmul.bf16 %v260, 1045249613
    %v263 = vmul.bf16 %v261, 1045249613
    %v264 = vmax.bf16 %v260, %v262
    %v265 = vmax.bf16 %v261, %v263
    %v266 = vld [vmem:[#allocation7] sm:$0xff]
    %v267 = vld [vmem:[#allocation7 + $0x8] sm:$0xff]
    %v268 = vld [vmem:[#allocation7 + $0x10] sm:$0xff]
    %v269 = vld [vmem:[#allocation7 + $0x18] sm:$0xff]
    %v270 = vld [vmem:[#allocation7 + $0x20] sm:$0xff]
    %v271 = vld [vmem:[#allocation7 + $0x28] sm:$0xff]
    %v272 = vld [vmem:[#allocation7 + $0x30] sm:$0xff]
    %v273 = vld [vmem:[#allocation7 + $0x38] sm:$0xff]
    %v274 = vld [vmem:[#allocation7 + $0x40] sm:$0xff]
    %v275 = vld [vmem:[#allocation7 + $0x48] sm:$0xff]
    %v276 = vld [vmem:[#allocation7 + $0x50] sm:$0xff]
    %v277 = vld [vmem:[#allocation7 + $0x58] sm:$0xff]
    %v278 = vld [vmem:[#allocation7 + $0x60] sm:$0xff]
    %v279 = vld [vmem:[#allocation7 + $0x68] sm:$0xff]
    %v280 = vld [vmem:[#allocation7 + $0x70] sm:$0xff]
    %v281 = vld [vmem:[#allocation7 + $0x78] sm:$0xff]
    %v282 = vld [vmem:[#allocation7 + $0x80] sm:$0xff]
    %v283 = vld [vmem:[#allocation7 + $0x88] sm:$0xff]
    %v284 = vld [vmem:[#allocation7 + $0x90] sm:$0xff]
    %v285 = vld [vmem:[#allocation7 + $0x98] sm:$0xff]
    %v286 = vld [vmem:[#allocation7 + $0xa0] sm:$0xff]
    %v287 = vld [vmem:[#allocation7 + $0xa8] sm:$0xff]
    %v288 = vld [vmem:[#allocation7 + $0xb0] sm:$0xff]
    %v289 = vld [vmem:[#allocation7 + $0xb8] sm:$0xff]
    %v290 = vld [vmem:[#allocation7 + $0xc0] sm:$0xff]
    %v291 = vld [vmem:[#allocation7 + $0xc8] sm:$0xff]
    %v292 = vld [vmem:[#allocation7 + $0xd0] sm:$0xff]
    %v293 = vld [vmem:[#allocation7 + $0xd8] sm:$0xff]
    %v294 = vld [vmem:[#allocation7 + $0xe0] sm:$0xff]
    %v295 = vld [vmem:[#allocation7 + $0xe8] sm:$0xff]
    %v296 = vld [vmem:[#allocation7 + $0xf0] sm:$0xff]
    %v297 = vld [vmem:[#allocation7 + $0xf8] sm:$0xff]
    %v298 = vld [vmem:[%s4] sm:$0x3]
    %v331 = vunpack.c.l.b16 %v266
    %v332 = vunpack.c.h.b16 %v266
    %v333 = vunpack.c.l.b16 %v267
    %v334 = vunpack.c.h.b16 %v267
    %v335 = vunpack.c.l.b16 %v268
    %v336 = vunpack.c.h.b16 %v268
    %v337 = vunpack.c.l.b16 %v269
    %v338 = vunpack.c.h.b16 %v269
    %v339 = vunpack.c.l.b16 %v270
    %v340 = vunpack.c.h.b16 %v270
    %v341 = vunpack.c.l.b16 %v271
    %v342 = vunpack.c.h.b16 %v271
    %v343 = vunpack.c.l.b16 %v272
    %v344 = vunpack.c.h.b16 %v272
    %v345 = vunpack.c.l.b16 %v273
    %v346 = vunpack.c.h.b16 %v273
    %v347 = vunpack.c.l.b16 %v274
    %v348 = vunpack.c.h.b16 %v274
    %v349 = vunpack.c.l.b16 %v275
    %v350 = vunpack.c.h.b16 %v275
    %v351 = vunpack.c.l.b16 %v276
    %v352 = vunpack.c.h.b16 %v276
    %v353 = vunpack.c.l.b16 %v277
    %v354 = vunpack.c.h.b16 %v277
    %v355 = vunpack.c.l.b16 %v278
    %v356 = vunpack.c.h.b16 %v278
    %v357 = vunpack.c.l.b16 %v279
    %v358 = vunpack.c.h.b16 %v279
    %v359 = vunpack.c.l.b16 %v280
    %v360 = vunpack.c.h.b16 %v280
    %v361 = vunpack.c.l.b16 %v281
    %v362 = vunpack.c.h.b16 %v281
    %v363 = vunpack.c.l.b16 %v282
    %v364 = vunpack.c.h.b16 %v282
    %v365 = vunpack.c.l.b16 %v283
    %v366 = vunpack.c.h.b16 %v283
    %v367 = vunpack.c.l.b16 %v284
    %v368 = vunpack.c.h.b16 %v284
    %v369 = vunpack.c.l.b16 %v285
    %v370 = vunpack.c.h.b16 %v285
    %v371 = vunpack.c.l.b16 %v286
    %v372 = vunpack.c.h.b16 %v286
    %v373 = vunpack.c.l.b16 %v287
    %v374 = vunpack.c.h.b16 %v287
    %v375 = vunpack.c.l.b16 %v288
    %v376 = vunpack.c.h.b16 %v288
    %v377 = vunpack.c.l.b16 %v289
    %v378 = vunpack.c.h.b16 %v289
    %v379 = vunpack.c.l.b16 %v290
    %v380 = vunpack.c.h.b16 %v290
    %v381 = vunpack.c.l.b16 %v291
    %v382 = vunpack.c.h.b16 %v291
    %v383 = vunpack.c.l.b16 %v292
    %v384 = vunpack.c.h.b16 %v292
    %v385 = vunpack.c.l.b16 %v293
    %v386 = vunpack.c.h.b16 %v293
    %v387 = vunpack.c.l.b16 %v294
    %v388 = vunpack.c.h.b16 %v294
    %v389 = vunpack.c.l.b16 %v295
    %v390 = vunpack.c.h.b16 %v295
    %v391 = vunpack.c.l.b16 %v296
    %v392 = vunpack.c.h.b16 %v296
    %v393 = vunpack.c.l.b16 %v297
    %v394 = vunpack.c.h.b16 %v297
    %v395 = vpack.c.b16 %v333, %v331
    %v396 = vpack.c.b16 %v334, %v332
    %v397 = vpack.c.b16 %v337, %v335
    %v398 = vpack.c.b16 %v338, %v336
    %v399 = vpack.c.b16 %v341, %v339
    %v400 = vpack.c.b16 %v342, %v340
    %v401 = vpack.c.b16 %v345, %v343
    %v402 = vpack.c.b16 %v346, %v344
    %v403 = vpack.c.b16 %v349, %v347
    %v404 = vpack.c.b16 %v350, %v348
    %v405 = vpack.c.b16 %v353, %v351
    %v406 = vpack.c.b16 %v354, %v352
    %v407 = vpack.c.b16 %v357, %v355
    %v408 = vpack.c.b16 %v358, %v356
    %v409 = vpack.c.b16 %v361, %v359
    %v410 = vpack.c.b16 %v362, %v360
    %v411 = vpack.c.b16 %v365, %v363
    %v412 = vpack.c.b16 %v366, %v364
    %v413 = vpack.c.b16 %v369, %v367
    %v414 = vpack.c.b16 %v370, %v368
    %v415 = vpack.c.b16 %v373, %v371
    %v416 = vpack.c.b16 %v374, %v372
    %v417 = vpack.c.b16 %v377, %v375
    %v418 = vpack.c.b16 %v378, %v376
    %v419 = vpack.c.b16 %v381, %v379
    %v420 = vpack.c.b16 %v382, %v380
    %v421 = vpack.c.b16 %v385, %v383
    %v422 = vpack.c.b16 %v386, %v384
    %v423 = vpack.c.b16 %v389, %v387
    %v424 = vpack.c.b16 %v390, %v388
    %v425 = vpack.c.b16 %v393, %v391
    %v426 = vpack.c.b16 %v394, %v392
    %459 = vmatprep.subr.bf16.mxu0 %v410
    %460 = vmatpush1.bf16.msra.mxu0 %v409
    %461 = vmatprep.subr.bf16.mxu0 %v408
    %462 = vmatpush1.bf16.msra.mxu0 %v407
    %463 = vmatprep.subr.bf16.mxu0 %v406
    %464 = vmatpush1.bf16.msra.mxu0 %v405
    %465 = vmatprep.subr.bf16.mxu0 %v404
    %466 = vmatpush1.bf16.msra.mxu0 %v403
    %467 = vmatprep.subr.bf16.mxu0 %v402
    %468 = vmatpush1.bf16.msra.mxu0 %v401
    %469 = vmatprep.subr.bf16.mxu0 %v400
    %470 = vmatpush1.bf16.msra.mxu0 %v399
    %471 = vmatprep.subr.bf16.mxu0 %v398
    %472 = vmatpush1.bf16.msra.mxu0 %v397
    %473 = vmatprep.subr.bf16.mxu0 %v396
    %474 = vmatpush1.bf16.msra.mxu0 %v395
    %475 = vmatprep.subr.bf16.mxu0 %v426
    %476 = vmatpush2.bf16.msra.mxu0 %v425
    %477 = vmatprep.subr.bf16.mxu0 %v424
    %478 = vmatpush2.bf16.msra.mxu0 %v423
    %479 = vmatprep.subr.bf16.mxu0 %v422
    %480 = vmatpush2.bf16.msra.mxu0 %v421
    %481 = vmatprep.subr.bf16.mxu0 %v420
    %482 = vmatpush2.bf16.msra.mxu0 %v419
    %483 = vmatprep.subr.bf16.mxu0 %v418
    %484 = vmatpush2.bf16.msra.mxu0 %v417
    %485 = vmatprep.subr.bf16.mxu0 %v416
    %486 = vmatpush2.bf16.msra.mxu0 %v415
    %487 = vmatprep.subr.bf16.mxu0 %v414
    %488 = vmatpush2.bf16.msra.mxu0 %v413
    %489 = vmatprep.subr.bf16.mxu0 %v412
    %490 = vmatpush2.bf16.msra.mxu0 %v411
    %491 = vmatprep.mubr.bf16.mxu0 %v265
    %492 = vmatmul.mubr.bf16.gmra.mxu0 %v264
    %v493 = vpop.f32.mrf.mxu0
    %v494 = vadd.f32 0.0, %v493
    %v495 = vpop.f32.mrf.mxu0
    %v496 = vadd.f32 0.0, %v495
    %v497 = vpop.f32.mrf.mxu0
    %v498 = vpop.f32.mrf.mxu0
    %499 = vdwg.mxu0
    %v500 = vpack.c.bf16 %v494, %v494
    %v501 = vpack.c.bf16 %v496, %v496
    %v503 = vlaneseq
    %v504 = vshrl.u32 %v503, 7
    %v505 = vsub.s32 0, %v504
    %v506 = vrot.slane %v298, %v505
    %v507 = vlaneseq
    %v508 = vshrl.u32 %v507, 7
    %v509 = vsub.s32 1, %v508
    %v510 = vrot.slane %v298, %v509
    %v513 = vpack.c.bf16 %v506, %v506
    %v514 = vpack.c.bf16 %v510, %v510
    %v516 = vpack.i.b16 %v513, %v513
    %v518 = vlaneseq
    %v519 = vshrl.u32 %v518, 7
    %v520 = vsub.s32 0, %v519
    %v521 = vrot.slane %v516, %v520
    %v523 = vpack.i.b16 %v514, %v514
    %v525 = vlaneseq
    %v526 = vshrl.u32 %v525, 7
    %v527 = vsub.s32 0, %v526
    %v528 = vrot.slane %v523, %v527
    %v529 = vadd.bf16 %v500, %v521
    %v530 = vadd.bf16 %v501, %v528
    %v531 = vmul.bf16 %v529, 1045249613
    %v532 = vmul.bf16 %v530, 1045249613
    %v533 = vmax.bf16 %v529, %v531
    %v534 = vmax.bf16 %v530, %v532
    %v535 = vld [vmem:[#allocation8] sm:$0xf]
    %v536 = vld [vmem:[#allocation8 + $0x4] sm:$0xf]
    %v537 = vld [vmem:[#allocation8 + $0x8] sm:$0xf]
    %v538 = vld [vmem:[#allocation8 + $0xc] sm:$0xf]
    %v539 = vld [vmem:[#allocation8 + $0x10] sm:$0xf]
    %v540 = vld [vmem:[#allocation8 + $0x14] sm:$0xf]
    %v541 = vld [vmem:[#allocation8 + $0x18] sm:$0xf]
    %v542 = vld [vmem:[#allocation8 + $0x1c] sm:$0xf]
    %v543 = vld [vmem:[#allocation8 + $0x20] sm:$0xf]
    %v544 = vld [vmem:[#allocation8 + $0x24] sm:$0xf]
    %v545 = vld [vmem:[#allocation8 + $0x28] sm:$0xf]
    %v546 = vld [vmem:[#allocation8 + $0x2c] sm:$0xf]
    %v547 = vld [vmem:[#allocation8 + $0x30] sm:$0xf]
    %v548 = vld [vmem:[#allocation8 + $0x34] sm:$0xf]
    %v549 = vld [vmem:[#allocation8 + $0x38] sm:$0xf]
    %v550 = vld [vmem:[#allocation8 + $0x3c] sm:$0xf]
    %v551 = vld [vmem:[#allocation8 + $0x40] sm:$0xf]
    %v552 = vld [vmem:[#allocation8 + $0x44] sm:$0xf]
    %v553 = vld [vmem:[#allocation8 + $0x48] sm:$0xf]
    %v554 = vld [vmem:[#allocation8 + $0x4c] sm:$0xf]
    %v555 = vld [vmem:[#allocation8 + $0x50] sm:$0xf]
    %v556 = vld [vmem:[#allocation8 + $0x54] sm:$0xf]
    %v557 = vld [vmem:[#allocation8 + $0x58] sm:$0xf]
    %v558 = vld [vmem:[#allocation8 + $0x5c] sm:$0xf]
    %v559 = vld [vmem:[#allocation8 + $0x60] sm:$0xf]
    %v560 = vld [vmem:[#allocation8 + $0x64] sm:$0xf]
    %v561 = vld [vmem:[#allocation8 + $0x68] sm:$0xf]
    %v562 = vld [vmem:[#allocation8 + $0x6c] sm:$0xf]
    %v563 = vld [vmem:[#allocation8 + $0x70] sm:$0xf]
    %v564 = vld [vmem:[#allocation8 + $0x74] sm:$0xf]
    %v565 = vld [vmem:[#allocation8 + $0x78] sm:$0xf]
    %v566 = vld [vmem:[#allocation8 + $0x7c] sm:$0xf]
    %v567 = vld [vmem:[%s6] sm:$0x1]
    %v600 = vunpack.c.l.b16 %v535
    %v601 = vunpack.c.l.b16 %v536
    %v602 = vunpack.c.l.b16 %v537
    %v603 = vunpack.c.l.b16 %v538
    %v604 = vunpack.c.l.b16 %v539
    %v605 = vunpack.c.l.b16 %v540
    %v606 = vunpack.c.l.b16 %v541
    %v607 = vunpack.c.l.b16 %v542
    %v608 = vunpack.c.l.b16 %v543
    %v609 = vunpack.c.l.b16 %v544
    %v610 = vunpack.c.l.b16 %v545
    %v611 = vunpack.c.l.b16 %v546
    %v612 = vunpack.c.l.b16 %v547
    %v613 = vunpack.c.l.b16 %v548
    %v614 = vunpack.c.l.b16 %v549
    %v615 = vunpack.c.l.b16 %v550
    %v616 = vunpack.c.l.b16 %v551
    %v617 = vunpack.c.l.b16 %v552
    %v618 = vunpack.c.l.b16 %v553
    %v619 = vunpack.c.l.b16 %v554
    %v620 = vunpack.c.l.b16 %v555
    %v621 = vunpack.c.l.b16 %v556
    %v622 = vunpack.c.l.b16 %v557
    %v623 = vunpack.c.l.b16 %v558
    %v624 = vunpack.c.l.b16 %v559
    %v625 = vunpack.c.l.b16 %v560
    %v626 = vunpack.c.l.b16 %v561
    %v627 = vunpack.c.l.b16 %v562
    %v628 = vunpack.c.l.b16 %v563
    %v629 = vunpack.c.l.b16 %v564
    %v630 = vunpack.c.l.b16 %v565
    %v631 = vunpack.c.l.b16 %v566
    %v632 = vpack.c.b16 %v601, %v600
    %v633 = vpack.c.b16 %v603, %v602
    %v634 = vpack.c.b16 %v605, %v604
    %v635 = vpack.c.b16 %v607, %v606
    %v636 = vpack.c.b16 %v609, %v608
    %v637 = vpack.c.b16 %v611, %v610
    %v638 = vpack.c.b16 %v613, %v612
    %v639 = vpack.c.b16 %v615, %v614
    %v640 = vpack.c.b16 %v617, %v616
    %v641 = vpack.c.b16 %v619, %v618
    %v642 = vpack.c.b16 %v621, %v620
    %v643 = vpack.c.b16 %v623, %v622
    %v644 = vpack.c.b16 %v625, %v624
    %v645 = vpack.c.b16 %v627, %v626
    %v646 = vpack.c.b16 %v629, %v628
    %v647 = vpack.c.b16 %v631, %v630
    %664 = vmatprep.subr.bf16.mxu0 0
    %665 = vmatpush1.bf16.msra.mxu0 %v639
    %666 = vmatprep.subr.bf16.mxu0 0
    %667 = vmatpush1.bf16.msra.mxu0 %v638
    %668 = vmatprep.subr.bf16.mxu0 0
    %669 = vmatpush1.bf16.msra.mxu0 %v637
    %670 = vmatprep.subr.bf16.mxu0 0
    %671 = vmatpush1.bf16.msra.mxu0 %v636
    %672 = vmatprep.subr.bf16.mxu0 0
    %673 = vmatpush1.bf16.msra.mxu0 %v635
    %674 = vmatprep.subr.bf16.mxu0 0
    %675 = vmatpush1.bf16.msra.mxu0 %v634
    %676 = vmatprep.subr.bf16.mxu0 0
    %677 = vmatpush1.bf16.msra.mxu0 %v633
    %678 = vmatprep.subr.bf16.mxu0 0
    %679 = vmatpush1.bf16.msra.mxu0 %v632
    %680 = vmatprep.subr.bf16.mxu0 0
    %681 = vmatpush2.bf16.msra.mxu0 %v647
    %682 = vmatprep.subr.bf16.mxu0 0
    %683 = vmatpush2.bf16.msra.mxu0 %v646
    %684 = vmatprep.subr.bf16.mxu0 0
    %685 = vmatpush2.bf16.msra.mxu0 %v645
    %686 = vmatprep.subr.bf16.mxu0 0
    %687 = vmatpush2.bf16.msra.mxu0 %v644
    %688 = vmatprep.subr.bf16.mxu0 0
    %689 = vmatpush2.bf16.msra.mxu0 %v643
    %690 = vmatprep.subr.bf16.mxu0 0
    %691 = vmatpush2.bf16.msra.mxu0 %v642
    %692 = vmatprep.subr.bf16.mxu0 0
    %693 = vmatpush2.bf16.msra.mxu0 %v641
    %694 = vmatprep.subr.bf16.mxu0 0
    %695 = vmatpush2.bf16.msra.mxu0 %v640
    %696 = vmatprep.mubr.bf16.mxu0 %v534
    %697 = vmatmul.mubr.bf16.gmra.mxu0 %v533
    %v698 = vpop.f32.mrf.mxu0
    %v699 = vadd.f32 0.0, %v698
    %v700 = vpop.f32.mrf.mxu0
    %v701 = vpop.f32.mrf.mxu0
    %v702 = vpop.f32.mrf.mxu0
    %703 = vdwg.mxu0
    %v704 = vpack.c.bf16 %v699, %v699
    %v705 = vpack.c.bf16 %v567, %v567
    %v707 = vpack.i.b16 %v705, %v705
    %v709 = vlaneseq
    %v710 = vshrl.u32 %v709, 7
    %v711 = vsub.s32 0, %v710
    %v712 = vrot.slane %v707, %v711
    %v713 = vadd.bf16 %v704, %v712
    %v714 = vmul.bf16 %v713, 1045249613
    %v715 = vmax.bf16 %v713, %v714
    %v716 = vld [vmem:[#allocation10] sm:$0xf]
    %v717 = vld [vmem:[#allocation10 + $0x4] sm:$0xf]
    %v718 = vld [vmem:[#allocation10 + $0x8] sm:$0xf]
    %v719 = vld [vmem:[#allocation10 + $0xc] sm:$0xf]
    %v720 = vld [vmem:[#allocation10 + $0x10] sm:$0xf]
    %v721 = vld [vmem:[#allocation10 + $0x14] sm:$0xf]
    %v722 = vld [vmem:[#allocation10 + $0x18] sm:$0xf]
    %v723 = vld [vmem:[#allocation10 + $0x1c] sm:$0xf]
    %v724 = vld [vmem:[#allocation10 + $0x20] sm:$0xf]
    %v725 = vld [vmem:[#allocation10 + $0x24] sm:$0xf]
    %v726 = vld [vmem:[#allocation10 + $0x28] sm:$0xf]
    %v727 = vld [vmem:[#allocation10 + $0x2c] sm:$0xf]
    %v728 = vld [vmem:[#allocation10 + $0x30] sm:$0xf]
    %v729 = vld [vmem:[#allocation10 + $0x34] sm:$0xf]
    %v730 = vld [vmem:[#allocation10 + $0x38] sm:$0xf]
    %v731 = vld [vmem:[#allocation10 + $0x3c] sm:$0xf]
    %v732 = vld [vmem:[%s8] sm:$0x1]
    %v749 = vunpack.c.l.b16 %v716
    %v750 = vunpack.c.l.b16 %v717
    %v751 = vunpack.c.l.b16 %v718
    %v752 = vunpack.c.l.b16 %v719
    %v753 = vunpack.c.l.b16 %v720
    %v754 = vunpack.c.l.b16 %v721
    %v755 = vunpack.c.l.b16 %v722
    %v756 = vunpack.c.l.b16 %v723
    %v757 = vunpack.c.l.b16 %v724
    %v758 = vunpack.c.l.b16 %v725
    %v759 = vunpack.c.l.b16 %v726
    %v760 = vunpack.c.l.b16 %v727
    %v761 = vunpack.c.l.b16 %v728
    %v762 = vunpack.c.l.b16 %v729
    %v763 = vunpack.c.l.b16 %v730
    %v764 = vunpack.c.l.b16 %v731
    %v765 = vpack.c.b16 %v750, %v749
    %v766 = vpack.c.b16 %v752, %v751
    %v767 = vpack.c.b16 %v754, %v753
    %v768 = vpack.c.b16 %v756, %v755
    %v769 = vpack.c.b16 %v758, %v757
    %v770 = vpack.c.b16 %v760, %v759
    %v771 = vpack.c.b16 %v762, %v761
    %v772 = vpack.c.b16 %v764, %v763
    %781 = vmatprep.subr.bf16.mxu0 0
    %782 = vmatpush1.bf16.msra.mxu0 %v772
    %783 = vmatprep.subr.bf16.mxu0 0
    %784 = vmatpush1.bf16.msra.mxu0 %v771
    %785 = vmatprep.subr.bf16.mxu0 0
    %786 = vmatpush1.bf16.msra.mxu0 %v770
    %787 = vmatprep.subr.bf16.mxu0 0
    %788 = vmatpush1.bf16.msra.mxu0 %v769
    %789 = vmatprep.subr.bf16.mxu0 0
    %790 = vmatpush1.bf16.msra.mxu0 %v768
    %791 = vmatprep.subr.bf16.mxu0 0
    %792 = vmatpush1.bf16.msra.mxu0 %v767
    %793 = vmatprep.subr.bf16.mxu0 0
    %794 = vmatpush1.bf16.msra.mxu0 %v766
    %795 = vmatprep.subr.bf16.mxu0 0
    %796 = vmatpush1.bf16.msra.mxu0 %v765
    %797 = vmatprep.subr.bf16.mxu0 0
    %798 = vmatpush2.bf16.msra.mxu0 0
    %799 = vmatprep.subr.bf16.mxu0 0
    %800 = vmatpush2.bf16.msra.mxu0 0
    %801 = vmatprep.subr.bf16.mxu0 0
    %802 = vmatpush2.bf16.msra.mxu0 0
    %803 = vmatprep.subr.bf16.mxu0 0
    %804 = vmatpush2.bf16.msra.mxu0 0
    %805 = vmatprep.subr.bf16.mxu0 0
    %806 = vmatpush2.bf16.msra.mxu0 0
    %807 = vmatprep.subr.bf16.mxu0 0
    %808 = vmatpush2.bf16.msra.mxu0 0
    %809 = vmatprep.subr.bf16.mxu0 0
    %810 = vmatpush2.bf16.msra.mxu0 0
    %811 = vmatprep.subr.bf16.mxu0 0
    %812 = vmatpush2.bf16.msra.mxu0 0
    %813 = vmatprep.mubr.bf16.mxu0 0
    %814 = vmatmul.mubr.bf16.gmra.mxu0 %v715
    %v815 = vpop.f32.mrf.mxu0
    %v816 = vadd.f32 0.0, %v815
    %v817 = vpop.f32.mrf.mxu0
    %v818 = vpop.f32.mrf.mxu0
    %v819 = vpop.f32.mrf.mxu0
    %820 = vdwg.mxu0
    %v821 = vpack.c.bf16 %v816, %v816
    %v822 = vpack.c.bf16 %v732, %v732
    %v824 = vpack.i.b16 %v822, %v822
    %v826 = vlaneseq
    %v827 = vshrl.u32 %v826, 7
    %v828 = vsub.s32 0, %v827
    %v829 = vrot.slane %v824, %v828
    %v830 = vadd.bf16 %v821, %v829
    %v831 = vmul.bf16 %v830, 1045249613
    %v832 = vmax.bf16 %v830, %v831
    %v833 = vld [vmem:[#allocation11] sm:$0xf]
    %v834 = vld [vmem:[#allocation11 + $0x4] sm:$0xf]
    %v835 = vld [vmem:[#allocation11 + $0x8] sm:$0xf]
    %v836 = vld [vmem:[#allocation11 + $0xc] sm:$0xf]
    %v837 = vld [vmem:[#allocation11 + $0x10] sm:$0xf]
    %v838 = vld [vmem:[#allocation11 + $0x14] sm:$0xf]
    %v839 = vld [vmem:[#allocation11 + $0x18] sm:$0xf]
    %v840 = vld [vmem:[#allocation11 + $0x1c] sm:$0xf]
    %v841 = vld [vmem:[#allocation11 + $0x20] sm:$0xf]
    %v842 = vld [vmem:[#allocation11 + $0x24] sm:$0xf]
    %v843 = vld [vmem:[#allocation11 + $0x28] sm:$0xf]
    %v844 = vld [vmem:[#allocation11 + $0x2c] sm:$0xf]
    %v845 = vld [vmem:[#allocation11 + $0x30] sm:$0xf]
    %v846 = vld [vmem:[#allocation11 + $0x34] sm:$0xf]
    %v847 = vld [vmem:[#allocation11 + $0x38] sm:$0xf]
    %v848 = vld [vmem:[#allocation11 + $0x3c] sm:$0xf]
    %v849 = vld [vmem:[%s10] sm:$0x1]
    %v866 = vunpack.c.l.b16 %v833
    %v867 = vunpack.c.l.b16 %v834
    %v868 = vunpack.c.l.b16 %v835
    %v869 = vunpack.c.l.b16 %v836
    %v870 = vunpack.c.l.b16 %v837
    %v871 = vunpack.c.l.b16 %v838
    %v872 = vunpack.c.l.b16 %v839
    %v873 = vunpack.c.l.b16 %v840
    %v874 = vunpack.c.l.b16 %v841
    %v875 = vunpack.c.l.b16 %v842
    %v876 = vunpack.c.l.b16 %v843
    %v877 = vunpack.c.l.b16 %v844
    %v878 = vunpack.c.l.b16 %v845
    %v879 = vunpack.c.l.b16 %v846
    %v880 = vunpack.c.l.b16 %v847
    %v881 = vunpack.c.l.b16 %v848
    %v882 = vpack.c.b16 %v867, %v866
    %v883 = vpack.c.b16 %v869, %v868
    %v884 = vpack.c.b16 %v871, %v870
    %v885 = vpack.c.b16 %v873, %v872
    %v886 = vpack.c.b16 %v875, %v874
    %v887 = vpack.c.b16 %v877, %v876
    %v888 = vpack.c.b16 %v879, %v878
    %v889 = vpack.c.b16 %v881, %v880
    %898 = vmatprep.subr.bf16.mxu0 0
    %899 = vmatpush1.bf16.msra.mxu0 %v889
    %900 = vmatprep.subr.bf16.mxu0 0
    %901 = vmatpush1.bf16.msra.mxu0 %v888
    %902 = vmatprep.subr.bf16.mxu0 0
    %903 = vmatpush1.bf16.msra.mxu0 %v887
    %904 = vmatprep.subr.bf16.mxu0 0
    %905 = vmatpush1.bf16.msra.mxu0 %v886
    %906 = vmatprep.subr.bf16.mxu0 0
    %907 = vmatpush1.bf16.msra.mxu0 %v885
    %908 = vmatprep.subr.bf16.mxu0 0
    %909 = vmatpush1.bf16.msra.mxu0 %v884
    %910 = vmatprep.subr.bf16.mxu0 0
    %911 = vmatpush1.bf16.msra.mxu0 %v883
    %912 = vmatprep.subr.bf16.mxu0 0
    %913 = vmatpush1.bf16.msra.mxu0 %v882
    %914 = vmatprep.subr.bf16.mxu0 0
    %915 = vmatpush2.bf16.msra.mxu0 0
    %916 = vmatprep.subr.bf16.mxu0 0
    %917 = vmatpush2.bf16.msra.mxu0 0
    %918 = vmatprep.subr.bf16.mxu0 0
    %919 = vmatpush2.bf16.msra.mxu0 0
    %920 = vmatprep.subr.bf16.mxu0 0
    %921 = vmatpush2.bf16.msra.mxu0 0
    %922 = vmatprep.subr.bf16.mxu0 0
    %923 = vmatpush2.bf16.msra.mxu0 0
    %924 = vmatprep.subr.bf16.mxu0 0
    %925 = vmatpush2.bf16.msra.mxu0 0
    %926 = vmatprep.subr.bf16.mxu0 0
    %927 = vmatpush2.bf16.msra.mxu0 0
    %928 = vmatprep.subr.bf16.mxu0 0
    %929 = vmatpush2.bf16.msra.mxu0 0
    %930 = vmatprep.mubr.bf16.mxu0 0
    %931 = vmatmul.mubr.bf16.gmra.mxu0 %v832
    %v932 = vpop.f32.mrf.mxu0
    %v933 = vadd.f32 0.0, %v932
    %v934 = vpop.f32.mrf.mxu0
    %v935 = vpop.f32.mrf.mxu0
    %v936 = vpop.f32.mrf.mxu0
    %937 = vdwg.mxu0
    %v938 = vpack.c.bf16 %v933, %v933
    %v939 = vpack.c.bf16 %v849, %v849
    %v941 = vpack.i.b16 %v939, %v939
    %v943 = vlaneseq
    %v944 = vshrl.u32 %v943, 7
    %v945 = vsub.s32 0, %v944
    %v946 = vrot.slane %v941, %v945
    %v947 = vadd.bf16 %v938, %v946
    %v948 = vmul.bf16 %v947, 1045249613
    %v949 = vmax.bf16 %v947, %v948
    %v950 = vld [vmem:[#allocation13] sm:$0xf]
    %v951 = vld [vmem:[#allocation13 + $0x4] sm:$0xf]
    %v952 = vld [vmem:[#allocation13 + $0x8] sm:$0xf]
    %v953 = vld [vmem:[#allocation13 + $0xc] sm:$0xf]
    %v954 = vld [vmem:[#allocation13 + $0x10] sm:$0xf]
    %v955 = vld [vmem:[#allocation13 + $0x14] sm:$0xf]
    %v956 = vld [vmem:[#allocation13 + $0x18] sm:$0xf]
    %v957 = vld [vmem:[#allocation13 + $0x1c] sm:$0xf]
    %v958 = vld [vmem:[#allocation13 + $0x20] sm:$0xf]
    %v959 = vld [vmem:[#allocation13 + $0x24] sm:$0xf]
    %v960 = vld [vmem:[#allocation13 + $0x28] sm:$0xf]
    %v961 = vld [vmem:[#allocation13 + $0x2c] sm:$0xf]
    %v962 = vld [vmem:[#allocation13 + $0x30] sm:$0xf]
    %v963 = vld [vmem:[#allocation13 + $0x34] sm:$0xf]
    %v964 = vld [vmem:[#allocation13 + $0x38] sm:$0xf]
    %v965 = vld [vmem:[#allocation13 + $0x3c] sm:$0xf]
    %v966 = vld [vmem:[%s12] sm:$0x1]
    %v983 = vunpack.c.l.b16 %v950
    %v984 = vunpack.c.l.b16 %v951
    %v985 = vunpack.c.l.b16 %v952
    %v986 = vunpack.c.l.b16 %v953
    %v987 = vunpack.c.l.b16 %v954
    %v988 = vunpack.c.l.b16 %v955
    %v989 = vunpack.c.l.b16 %v956
    %v990 = vunpack.c.l.b16 %v957
    %v991 = vunpack.c.l.b16 %v958
    %v992 = vunpack.c.l.b16 %v959
    %v993 = vunpack.c.l.b16 %v960
    %v994 = vunpack.c.l.b16 %v961
    %v995 = vunpack.c.l.b16 %v962
    %v996 = vunpack.c.l.b16 %v963
    %v997 = vunpack.c.l.b16 %v964
    %v998 = vunpack.c.l.b16 %v965
    %v999 = vpack.c.b16 %v984, %v983
    %v1000 = vpack.c.b16 %v986, %v985
    %v1001 = vpack.c.b16 %v988, %v987
    %v1002 = vpack.c.b16 %v990, %v989
    %v1003 = vpack.c.b16 %v992, %v991
    %v1004 = vpack.c.b16 %v994, %v993
    %v1005 = vpack.c.b16 %v996, %v995
    %v1006 = vpack.c.b16 %v998, %v997
    %1015 = vmatprep.subr.bf16.mxu0 0
    %1016 = vmatpush1.bf16.msra.mxu0 %v1006
    %1017 = vmatprep.subr.bf16.mxu0 0
    %1018 = vmatpush1.bf16.msra.mxu0 %v1005
    %1019 = vmatprep.subr.bf16.mxu0 0
    %1020 = vmatpush1.bf16.msra.mxu0 %v1004
    %1021 = vmatprep.subr.bf16.mxu0 0
    %1022 = vmatpush1.bf16.msra.mxu0 %v1003
    %1023 = vmatprep.subr.bf16.mxu0 0
    %1024 = vmatpush1.bf16.msra.mxu0 %v1002
    %1025 = vmatprep.subr.bf16.mxu0 0
    %1026 = vmatpush1.bf16.msra.mxu0 %v1001
    %1027 = vmatprep.subr.bf16.mxu0 0
    %1028 = vmatpush1.bf16.msra.mxu0 %v1000
    %1029 = vmatprep.subr.bf16.mxu0 0
    %1030 = vmatpush1.bf16.msra.mxu0 %v999
    %1031 = vmatprep.subr.bf16.mxu0 0
    %1032 = vmatpush2.bf16.msra.mxu0 0
    %1033 = vmatprep.subr.bf16.mxu0 0
    %1034 = vmatpush2.bf16.msra.mxu0 0
    %1035 = vmatprep.subr.bf16.mxu0 0
    %1036 = vmatpush2.bf16.msra.mxu0 0
    %1037 = vmatprep.subr.bf16.mxu0 0
    %1038 = vmatpush2.bf16.msra.mxu0 0
    %1039 = vmatprep.subr.bf16.mxu0 0
    %1040 = vmatpush2.bf16.msra.mxu0 0
    %1041 = vmatprep.subr.bf16.mxu0 0
    %1042 = vmatpush2.bf16.msra.mxu0 0
    %1043 = vmatprep.subr.bf16.mxu0 0
    %1044 = vmatpush2.bf16.msra.mxu0 0
    %1045 = vmatprep.subr.bf16.mxu0 0
    %1046 = vmatpush2.bf16.msra.mxu0 0
    %1047 = vmatprep.mubr.bf16.mxu0 0
    %1048 = vmatmul.mubr.bf16.gmra.mxu0 %v949
    %v1049 = vpop.f32.mrf.mxu0
    %v1050 = vadd.f32 0.0, %v1049
    %v1051 = vpop.f32.mrf.mxu0
    %v1052 = vpop.f32.mrf.mxu0
    %v1053 = vpop.f32.mrf.mxu0
    %1054 = vdwg.mxu0
    %v1055 = vpack.c.bf16 %v1050, %v1050
    %v1056 = vpack.c.bf16 %v966, %v966
    %v1058 = vpack.i.b16 %v1056, %v1056
    %v1060 = vlaneseq
    %v1061 = vshrl.u32 %v1060, 7
    %v1062 = vsub.s32 0, %v1061
    %v1063 = vrot.slane %v1058, %v1062
    %v1064 = vadd.bf16 %v1055, %v1063
    %v1065 = vmul.bf16 %v1064, 1045249613
    %v1066 = vmax.bf16 %v1064, %v1065
    %v1067 = vld [vmem:[#allocation14] sm:$0xf]
    %v1068 = vld [vmem:[#allocation14 + $0x4] sm:$0xf]
    %v1069 = vld [vmem:[#allocation14 + $0x8] sm:$0xf]
    %v1070 = vld [vmem:[#allocation14 + $0xc] sm:$0xf]
    %v1071 = vld [vmem:[#allocation14 + $0x10] sm:$0xf]
    %v1072 = vld [vmem:[#allocation14 + $0x14] sm:$0xf]
    %v1073 = vld [vmem:[#allocation14 + $0x18] sm:$0xf]
    %v1074 = vld [vmem:[#allocation14 + $0x1c] sm:$0xf]
    %v1075 = vld [vmem:[#allocation14 + $0x20] sm:$0xf]
    %v1076 = vld [vmem:[#allocation14 + $0x24] sm:$0xf]
    %v1077 = vld [vmem:[#allocation14 + $0x28] sm:$0xf]
    %v1078 = vld [vmem:[#allocation14 + $0x2c] sm:$0xf]
    %v1079 = vld [vmem:[#allocation14 + $0x30] sm:$0xf]
    %v1080 = vld [vmem:[#allocation14 + $0x34] sm:$0xf]
    %v1081 = vld [vmem:[#allocation14 + $0x38] sm:$0xf]
    %v1082 = vld [vmem:[#allocation14 + $0x3c] sm:$0xf]
    %v1083 = vld [vmem:[%s14] sm:$0x1]
    %v1100 = vunpack.c.l.b16 %v1067
    %v1101 = vunpack.c.l.b16 %v1068
    %v1102 = vunpack.c.l.b16 %v1069
    %v1103 = vunpack.c.l.b16 %v1070
    %v1104 = vunpack.c.l.b16 %v1071
    %v1105 = vunpack.c.l.b16 %v1072
    %v1106 = vunpack.c.l.b16 %v1073
    %v1107 = vunpack.c.l.b16 %v1074
    %v1108 = vunpack.c.l.b16 %v1075
    %v1109 = vunpack.c.l.b16 %v1076
    %v1110 = vunpack.c.l.b16 %v1077
    %v1111 = vunpack.c.l.b16 %v1078
    %v1112 = vunpack.c.l.b16 %v1079
    %v1113 = vunpack.c.l.b16 %v1080
    %v1114 = vunpack.c.l.b16 %v1081
    %v1115 = vunpack.c.l.b16 %v1082
    %v1116 = vpack.c.b16 %v1101, %v1100
    %v1117 = vpack.c.b16 %v1103, %v1102
    %v1118 = vpack.c.b16 %v1105, %v1104
    %v1119 = vpack.c.b16 %v1107, %v1106
    %v1120 = vpack.c.b16 %v1109, %v1108
    %v1121 = vpack.c.b16 %v1111, %v1110
    %v1122 = vpack.c.b16 %v1113, %v1112
    %v1123 = vpack.c.b16 %v1115, %v1114
    %1132 = vmatprep.subr.bf16.mxu0 0
    %1133 = vmatpush1.bf16.msra.mxu0 %v1123
    %1134 = vmatprep.subr.bf16.mxu0 0
    %1135 = vmatpush1.bf16.msra.mxu0 %v1122
    %1136 = vmatprep.subr.bf16.mxu0 0
    %1137 = vmatpush1.bf16.msra.mxu0 %v1121
    %1138 = vmatprep.subr.bf16.mxu0 0
    %1139 = vmatpush1.bf16.msra.mxu0 %v1120
    %1140 = vmatprep.subr.bf16.mxu0 0
    %1141 = vmatpush1.bf16.msra.mxu0 %v1119
    %1142 = vmatprep.subr.bf16.mxu0 0
    %1143 = vmatpush1.bf16.msra.mxu0 %v1118
    %1144 = vmatprep.subr.bf16.mxu0 0
    %1145 = vmatpush1.bf16.msra.mxu0 %v1117
    %1146 = vmatprep.subr.bf16.mxu0 0
    %1147 = vmatpush1.bf16.msra.mxu0 %v1116
    %1148 = vmatprep.subr.bf16.mxu0 0
    %1149 = vmatpush2.bf16.msra.mxu0 0
    %1150 = vmatprep.subr.bf16.mxu0 0
    %1151 = vmatpush2.bf16.msra.mxu0 0
    %1152 = vmatprep.subr.bf16.mxu0 0
    %1153 = vmatpush2.bf16.msra.mxu0 0
    %1154 = vmatprep.subr.bf16.mxu0 0
    %1155 = vmatpush2.bf16.msra.mxu0 0
    %1156 = vmatprep.subr.bf16.mxu0 0
    %1157 = vmatpush2.bf16.msra.mxu0 0
    %1158 = vmatprep.subr.bf16.mxu0 0
    %1159 = vmatpush2.bf16.msra.mxu0 0
    %1160 = vmatprep.subr.bf16.mxu0 0
    %1161 = vmatpush2.bf16.msra.mxu0 0
    %1162 = vmatprep.subr.bf16.mxu0 0
    %1163 = vmatpush2.bf16.msra.mxu0 0
    %1164 = vmatprep.mubr.bf16.mxu0 0
    %1165 = vmatmul.mubr.bf16.gmra.mxu0 %v1066
    %v1166 = vpop.f32.mrf.mxu0
    %v1167 = vadd.f32 0.0, %v1166
    %v1168 = vpop.f32.mrf.mxu0
    %v1169 = vpop.f32.mrf.mxu0
    %v1170 = vpop.f32.mrf.mxu0
    %1171 = vdwg.mxu0
    %v1173 = vlaneseq
    %v1174 = vshrl.u32 %v1173, 7
    %v1175 = vsub.s32 0, %v1174
    %v1176 = vrot.slane %v1083, %v1175
    %v1178 = vadd.f32 %v1167, %v1176
    %v1179 = vxor.u32 %v1178, 2147483648
    %v1180 = vmul.f32 %v1179, 1.442695
    %v1181 = vpow.pop %v1180
    %v1182 = vadd.f32 %v1181, 1.0
    %v1183 = vrcp.pop %v1182
    %v1184 = vmul.f32 1.0, %v1183
    %1185 = vxpose.xlu0.b32.start [1/16] %v1184, 128
    %1186 = vxpose.xlu0.b32.cont [2/16] 0.0, 128
    %1187 = vxpose.xlu0.b32.cont [3/16] 0.0, 128
    %1188 = vxpose.xlu0.b32.cont [4/16] 0.0, 128
    %1189 = vxpose.xlu0.b32.cont [5/16] 0.0, 128
    %1190 = vxpose.xlu0.b32.cont [6/16] 0.0, 128
    %1191 = vxpose.xlu0.b32.cont [7/16] 0.0, 128
    %1192 = vxpose.xlu0.b32.cont [8/16] 0.0, 128
    %1193 = vxpose.xlu0.b32.cont [9/16] 0.0, 128
    %1194 = vxpose.xlu0.b32.cont [10/16] 0.0, 128
    %1195 = vxpose.xlu0.b32.cont [11/16] 0.0, 128
    %1196 = vxpose.xlu0.b32.cont [12/16] 0.0, 128
    %1197 = vxpose.xlu0.b32.cont [13/16] 0.0, 128
    %1198 = vxpose.xlu0.b32.cont [14/16] 0.0, 128
    %1199 = vxpose.xlu0.b32.cont [15/16] 0.0, 128
    %1200 = vxpose.xlu0.b32.end [16/16] 0.0, 128
    %v1201 = vpop.trf.xlu0
    %v1202 = vpop.trf.xlu0
    %v1203 = vpop.trf.xlu0
    %v1204 = vpop.trf.xlu0
    %v1205 = vpop.trf.xlu0
    %v1206 = vpop.trf.xlu0
    %v1207 = vpop.trf.xlu0
    %v1208 = vpop.trf.xlu0
    %v1209 = vpop.trf.xlu0
    %v1210 = vpop.trf.xlu0
    %v1211 = vpop.trf.xlu0
    %v1212 = vpop.trf.xlu0
    %v1213 = vpop.trf.xlu0
    %v1214 = vpop.trf.xlu0
    %v1215 = vpop.trf.xlu0
    %v1216 = vpop.trf.xlu0
    %vm1217 = vcmask 57344
    %1218 = vst.msk [vmem:[#allocation16] sm:$0x1] %vm1217, %v1201
    // Predicated region
    $region94: #{tpu_custom_call.1} parent=1 // pred_check
      _
    $region95: #{tpu_custom_call.1} parent=1 // pred_check_branch
      %1220 = sbr.rel (0) target = $region97
    $region96: #{tpu_custom_call.1} parent=1 // pred_region
      %s1222 = ssub.s32 16, 16
      %1223 = vsyncadd [#allocation4], %s1222
      %s1225 = sshll.u32 [#allocation16], 4
      %s1226 = int_to_ptr.vmem [resolvable:$true] %s1225
      %1228 = dma.vmem_to_hbm [thread:$0]  %s1226, 16, %s15, [#allocation4]
    $region97: #{tpu_custom_call.1} parent=1 // pred_fallthru
      _
    // Predicated region
    $region98: #{tpu_custom_call.1} parent=1 // pred_check
      _
    $region99: #{tpu_custom_call.1} parent=1 // pred_check_branch
      %1230 = sbr.rel (0) target = $region101
    $region100: #{tpu_custom_call.1} parent=1 // pred_region
      %1231 = dma.done [#allocation4], 16
    $region101: #{tpu_custom_call.1} parent=1 // pred_fallthru
      _
    %1232 = vsyncpa [#allocation3], 1
    %1233 = vsyncpa [#allocation6], 1
    %1234 = vsyncpa [#allocation9], 1
    %1235 = vsyncpa [#allocation12], 1
    %1236 = vsyncpa [#allocation15], 1
    %1237 = vsyncpa [#allocation4], 1

</llo_original>
